<compile_context>
chip_gen: v7x
topology: tpu7x:2x2x1
jax: 0.10.0
libtpu: 0.0.40
codegen_flags: <defaults>
</compile_context>

<pallas_src>
import jax
import jax.numpy as jnp
from jax.experimental import pallas as pl
from jax.experimental.pallas import tpu as pltpu

_EPS = 1e-12  # torch F.normalize default eps (clamp applied to the norm)


def _round_up(n, m):
    return ((n + m - 1) // m) * m


def _inverse_embedding_kernel(x_ref, w_ref, o_ref, xn_ref):
    # x_ref : (tm, D)  flattened-input tile (resident across the j sweep)
    # w_ref : (tv, D)  embedding-weight tile
    # o_ref : (tm, tv) cosine-similarity tile
    # xn_ref: (tm, D)  bf16 scratch holding the normalized x tile
    j = pl.program_id(1)

    # Normalize the x tile once per i-block (at j == 0), reuse for all j.
    @pl.when(j == 0)
    def _():
        x = x_ref[...].astype(jnp.float32)
        sq = jnp.sum(x * x, axis=-1, keepdims=True)
        inv = jax.lax.rsqrt(jnp.maximum(sq, _EPS * _EPS))  # eps^2 on |x|^2
        xn_ref[...] = (x * inv).astype(xn_ref.dtype)

    # Normalize the weight tile (cheap VPU/EUP work vs. the matmul at large tv).
    w = w_ref[...].astype(jnp.float32)
    wsq = jnp.sum(w * w, axis=-1, keepdims=True)
    winv = jax.lax.rsqrt(jnp.maximum(wsq, _EPS * _EPS))
    wn = (w * winv).astype(jnp.bfloat16)

    # (tm, D) @ (tv, D)^T on the MXU: bf16 operands, f32 accumulate.
    sims = jax.lax.dot_general(
        xn_ref[...],
        wn,
        dimension_numbers=(((1,), (1,)), ((), ())),
        preferred_element_type=jnp.float32,
    )
    o_ref[...] = sims.astype(o_ref.dtype)


def inverse_embedding(x, weight, *, tm=256, tv=512, out_dtype=None):
    """Cosine similarities between rows of x and embedding rows.

    x: (..., D); weight: (V, D). Returns (..., V) in out_dtype (default x.dtype).
    tm: x rows per tile (128/256-aligned feeds the MXU fully on v5e/v6e/v7x).
    tv: vocab columns per tile (large multiple of 128 -> lane-dense stores,
        amortized weight normalization).
    """
    orig_shape = x.shape
    D = orig_shape[-1]
    V = weight.shape[0]
    out_dtype = x.dtype if out_dtype is None else jnp.dtype(out_dtype)

    x2d = x.reshape(-1, D)
    M = x2d.shape[0]

    # Shrink tiles for small problems while keeping (8, 128) alignment.
    tm_eff = min(tm, _round_up(M, 8))
    tv_eff = min(tv, _round_up(V, 128))

    # Zero-pad to tile multiples; padded rows/cols are sliced off afterwards.
    M_pad = _round_up(M, tm_eff)
    V_pad = _round_up(V, tv_eff)
    if M_pad != M:
        x2d = jnp.pad(x2d, ((0, M_pad - M), (0, 0)))
    w = weight
    if V_pad != V:
        w = jnp.pad(w, ((0, V_pad - V), (0, 0)))

    grid = (M_pad // tm_eff, V_pad // tv_eff)

    cost = pl.CostEstimate(
        flops=2 * M_pad * V_pad * D,
        transcendentals=M_pad + V_pad * grid[0],  # rsqrt per x row / per w-row visit
        bytes_accessed=(
            M_pad * D * x2d.dtype.itemsize            # x streamed once
            + grid[0] * V_pad * D * w.dtype.itemsize  # weight per i-block
            + M_pad * V_pad * jnp.dtype(out_dtype).itemsize
        ),
    )

    out = pl.pallas_call(
        _inverse_embedding_kernel,
        out_shape=jax.ShapeDtypeStruct((M_pad, V_pad), out_dtype),
        grid_spec=pltpu.PrefetchScalarGridSpec(
            num_scalar_prefetch=0,
            grid=grid,
            in_specs=[
                # x tile depends only on i -> stays resident across the j sweep.
                pl.BlockSpec((tm_eff, D), lambda i, j: (i, 0)),
                pl.BlockSpec((tv_eff, D), lambda i, j: (j, 0)),
            ],
            out_specs=pl.BlockSpec((tm_eff, tv_eff), lambda i, j: (i, j)),
            scratch_shapes=[pltpu.VMEM((tm_eff, D), jnp.bfloat16)],
        ),
        compiler_params=pltpu.CompilerParams(
            # Row axis shards across TensorCores (v7x); the vocab axis must stay
            # sequential because the normalized-x scratch is rebuilt at j == 0.
            dimension_semantics=("parallel", "arbitrary"),
        ),
        cost_estimate=cost,
    )(x2d, w)

    # TODO(synk): for D >= 4096, add a k grid axis over D with an f32 accumulator
    # and deferred 1/norm scaling to keep full-D tiles out of VMEM.
    out = out[:M, :V]
    return out.reshape(*orig_shape[:-1], V)


if __name__ == "__main__":
    # Small shapes consistent with an embedding layer:
    #   vocab V = 256, hidden D = 128, batch B = 2, seq S = 8
    B, S, D, V = 2, 8, 128, 256

    key = jax.random.PRNGKey(0)
    kx, kw = jax.random.split(key)
    x = jax.random.normal(kx, (B, S, D), dtype=jnp.float32)
    # Deterministic "embedding.weight" init (normal init, like nn.Embedding)
    weight = jax.random.normal(kw, (V, D), dtype=jnp.float32)

    sims = inverse_embedding(x, weight)
    sims = jax.block_until_ready(sims)

    # Reference check in plain JAX (f32). The kernel uses bf16 MXU operands,
    # so tolerance is relaxed vs. a pure-f32 matmul.
    xn = x / jnp.maximum(jnp.linalg.norm(x, axis=-1, keepdims=True), 1e-12)
    wn = weight / jnp.maximum(jnp.linalg.norm(weight, axis=-1, keepdims=True), 1e-12)
    ref = jnp.einsum("bsd,vd->bsv", xn, wn)

    assert sims.shape == (B, S, V), sims.shape
    max_err = float(jnp.max(jnp.abs(sims.astype(jnp.float32) - ref)))
    assert max_err < 2e-2, max_err
    print("KERNEL_OK")
</pallas_src>

<mosaic_0001>
module attributes {stable_mosaic.version = 11 : i64} {
  func.func @_inverse_embedding_kernel(%arg0: i32, %arg1: i32, %arg2: memref<16x128xf32, #tpu.memory_space<vmem>>, %arg3: memref<256x128xf32, #tpu.memory_space<vmem>>, %arg4: memref<16x256xf32, #tpu.memory_space<vmem>>, %arg5: memref<16x128xbf16, #tpu.memory_space<vmem>>) attributes {dimension_semantics = [#tpu.dimension_semantics<parallel>, #tpu.dimension_semantics<arbitrary>], iteration_bounds = array<i64: 1, 1>, scalar_prefetch = 0 : i64, scratch_operands = 1 : i64, tpu.core_type = #tpu.core_type<tc>, window_params = [{transform_indices = @transform_0, window_bounds = array<i64: 16, 128>}, {transform_indices = @transform_1, window_bounds = array<i64: 256, 128>}, {transform_indices = @transform_2, window_bounds = array<i64: 16, 256>}]} {
    %c0_i32 = arith.constant 0 : i32
    %0 = arith.cmpi eq, %arg1, %c0_i32 : i32
    %1 = arith.extui %0 : i1 to i32
    %c0_i32_0 = arith.constant 0 : i32
    %2 = arith.cmpi ne, %1, %c0_i32_0 : i32
    scf.if %2 {
      %c0_8 = arith.constant 0 : index
      %c0_9 = arith.constant 0 : index
      %16 = vector.load %arg2[%c0_8, %c0_9] : memref<16x128xf32, #tpu.memory_space<vmem>>, vector<16x128xf32>
      %17 = arith.mulf %16, %16 : vector<16x128xf32>
      %cst_10 = arith.constant dense<0.000000e+00> : vector<16xf32>
      %18 = vector.multi_reduction <add>, %17, %cst_10 [1] : vector<16x128xf32> to vector<16xf32>
      %19 = vector.shape_cast %18 : vector<16xf32> to vector<16x1xf32>
      %cst_11 = arith.constant 1.000000e-24 : f32
      %20 = vector.broadcast %cst_11 : f32 to vector<16x1xf32>
      %21 = arith.maximumf %19, %20 : vector<16x1xf32>
      %22 = math.rsqrt %21 : vector<16x1xf32>
      %23 = vector.broadcast %22 : vector<16x1xf32> to vector<16x128xf32>
      %24 = arith.mulf %16, %23 : vector<16x128xf32>
      %25 = arith.truncf %24 : vector<16x128xf32> to vector<16x128xbf16>
      %c0_12 = arith.constant 0 : index
      %c0_13 = arith.constant 0 : index
      %26 = vector.load %arg5[%c0_12, %c0_13] : memref<16x128xbf16, #tpu.memory_space<vmem>>, vector<16x128xbf16>
      tpu.vector_store %arg5[%c0_12, %c0_13], %25 {strides = array<i32>} : memref<16x128xbf16, #tpu.memory_space<vmem>>, vector<16x128xbf16>,
    } else {
    }
    %c0 = arith.constant 0 : index
    %c0_1 = arith.constant 0 : index
    %3 = vector.load %arg3[%c0, %c0_1] : memref<256x128xf32, #tpu.memory_space<vmem>>, vector<256x128xf32>
    %4 = arith.mulf %3, %3 : vector<256x128xf32>
    %cst = arith.constant dense<0.000000e+00> : vector<256xf32>
    %5 = vector.multi_reduction <add>, %4, %cst [1] : vector<256x128xf32> to vector<256xf32>
    %6 = vector.shape_cast %5 : vector<256xf32> to vector<256x1xf32>
    %cst_2 = arith.constant 1.000000e-24 : f32
    %7 = vector.broadcast %cst_2 : f32 to vector<256x1xf32>
    %8 = arith.maximumf %6, %7 : vector<256x1xf32>
    %9 = math.rsqrt %8 : vector<256x1xf32>
    %10 = vector.broadcast %9 : vector<256x1xf32> to vector<256x128xf32>
    %11 = arith.mulf %3, %10 : vector<256x128xf32>
    %12 = arith.truncf %11 : vector<256x128xf32> to vector<256x128xbf16>
    %c0_3 = arith.constant 0 : index
    %c0_4 = arith.constant 0 : index
    %13 = vector.load %arg5[%c0_3, %c0_4] : memref<16x128xbf16, #tpu.memory_space<vmem>>, vector<16x128xbf16>
    %cst_5 = arith.constant dense<0.000000e+00> : vector<16x256xf32>
    %14 = tpu.matmul %13, %12, %cst_5 {dimension_numbers = #tpu.dot_dimension_numbers<[1], [1], [0], [0], [0, 0, 1, 0], [], []>} : vector<16x128xbf16>, vector<256x128xbf16>, vector<16x256xf32> -> vector<16x256xf32>
    %c0_6 = arith.constant 0 : index
    %c0_7 = arith.constant 0 : index
    %15 = vector.load %arg4[%c0_6, %c0_7] : memref<16x256xf32, #tpu.memory_space<vmem>>, vector<16x256xf32>
    tpu.vector_store %arg4[%c0_6, %c0_7], %14 {strides = array<i32>} : memref<16x256xf32, #tpu.memory_space<vmem>>, vector<16x256xf32>,
    return
  }
  func.func @transform_0(%arg0: i32, %arg1: i32) -> (i32, i32) {
    %c0_i32 = arith.constant 0 : i32
    %c0_i32_0 = arith.constant 0 : i32
    return %arg0, %c0_i32 : i32, i32
  }
  func.func @transform_1(%arg0: i32, %arg1: i32) -> (i32, i32) {
    %c0_i32 = arith.constant 0 : i32
    %c0_i32_0 = arith.constant 0 : i32
    return %arg1, %c0_i32 : i32, i32
  }
  func.func @transform_2(%arg0: i32, %arg1: i32) -> (i32, i32) {
    %c0_i32 = arith.constant 0 : i32
    return %arg0, %arg1 : i32, i32
  }
}

</mosaic_0001>

<llo_original>
// kernel: tpu_custom_call.1
$region0: #{tpu_custom_call.1}
  #allocation0 [shape = 'u32[]', space=smem, size = 0x4, offset = 0x4, fixed_abs, tag = 'smem constant byte address 0x4 - core index']
  #allocation1 [shape = 'u32[144,128]{1,0:T(1,128)}', space=vmem, size = 0x12000, scoped, tag = 'internal scratch']
  #allocation2 [shape = 'bf16[16,128]{1,0:T(16,128)(2,1)}', space=vmem, size = 0x1000, scoped, tag = 'scratch operand']
  %s0 = inlined_call_operand.hbm [shape: f32[16,128], index: 0, kind: input, shape index: {}]
  %s1 = inlined_call_operand.hbm [shape: f32[256,128], index: 1, kind: input, shape index: {}]
  %s2 = inlined_call_operand.hbm [shape: f32[16,256], index: 2, kind: output, shape index: {}]
  %s3 = sld [smem:[#allocation0]]
  $region30: #{tpu_custom_call.1} parent=0
    _
  %s5 = ssub.s32 1, %s3
  %s6 = scalar_select 0, %s5, %s3
  $region1: #{tpu_custom_call.1} parent=0
    #allocation3 [shape = 'u8[8192]{0}', space=vmem, size = 0x2000, scoped, tag = 'input window, operand 0, single buffered']
    #allocation4 [shape = 's32[1]{0}', space=sflag, size = 0x4, scoped, tag = 'scoped memory for tpu_custom_call.1']
    #allocation5 [shape = 's32[1]{0}', space=sflag, size = 0x4, scoped, tag = 'scoped memory for tpu_custom_call.1']
    #allocation6 [shape = 'u8[131072]{0}', space=vmem, size = 0x20000, scoped, tag = 'input window, operand 1, single buffered']
    #allocation7 [shape = 's32[1]{0}', space=sflag, size = 0x4, scoped, tag = 'scoped memory for tpu_custom_call.1']
    #allocation8 [shape = 'u8[16384]{0}', space=vmem, size = 0x4000, scoped, tag = 'output window, operand 0, single buffered']
    %7 = vsyncpa [#allocation4], 0
    %8 = vsyncpa [#allocation7], 0
    %9 = vsyncpa [#allocation5], 0
    // Predicated region
    $region2: #{tpu_custom_call.1} parent=1 // pred_check
      _
    $region3: #{tpu_custom_call.1} parent=1 // pred_check_branch
      %11 = sbr.rel (0) target = $region5
    $region4: #{tpu_custom_call.1} parent=1 // pred_region
      %s13 = ssub.s32 256, 256
      %14 = vsyncadd [#allocation4], %s13
      %s15 = sshll.u32 [#allocation3], 4
      %s16 = int_to_ptr.vmem [resolvable:$true] %s15
      %21 = dma.hbm_to_vmem [thread:$0]  %s0, 256, %s16, [#allocation4], 128, 128, 8
    $region5: #{tpu_custom_call.1} parent=1 // pred_fallthru
      _
    // Predicated region
    $region6: #{tpu_custom_call.1} parent=1 // pred_check
      _
    $region7: #{tpu_custom_call.1} parent=1 // pred_check_branch
      %23 = sbr.rel (0) target = $region9
    $region8: #{tpu_custom_call.1} parent=1 // pred_region
      %s25 = ssub.s32 4096, 4096
      %26 = vsyncadd [#allocation7], %s25
      %s27 = sshll.u32 [#allocation6], 4
      %s28 = int_to_ptr.vmem [resolvable:$true] %s27
      %33 = dma.hbm_to_vmem [thread:$0]  %s1, 4096, %s28, [#allocation7], 128, 128, 8
    $region9: #{tpu_custom_call.1} parent=1 // pred_fallthru
      _
    // Predicated region
    $region10: #{tpu_custom_call.1} parent=1 // pred_check
      _
    $region11: #{tpu_custom_call.1} parent=1 // pred_check_branch
      %35 = sbr.rel (0) target = $region13
    $region12: #{tpu_custom_call.1} parent=1 // pred_region
      %36 = dma.done [#allocation4], 256
    $region13: #{tpu_custom_call.1} parent=1 // pred_fallthru
      _
    // Predicated region
    $region14: #{tpu_custom_call.1} parent=1 // pred_check
      _
    $region15: #{tpu_custom_call.1} parent=1 // pred_check_branch
      %38 = sbr.rel (0) target = $region17
    $region16: #{tpu_custom_call.1} parent=1 // pred_region
      %39 = dma.done [#allocation7], 4096
    $region17: #{tpu_custom_call.1} parent=1 // pred_fallthru
      _
    %p41 = scmp.eq.s32.totalorder 0, 0
    // Predicated region
    $region18: #{tpu_custom_call.1} parent=1 // pred_check
      %p42 = pneg %p41
    $region19: #{tpu_custom_call.1} parent=1 // pred_check_branch
      %44 = sbr.rel (%p42) target = $region21
    $region20: #{tpu_custom_call.1} parent=1 // pred_region
      %v45 = vld [vmem:[#allocation3] sm:$0xff]
      %v46 = vld [vmem:[#allocation3 + $0x8] sm:$0xff]
      %v47 = vmul.f32 %v45, %v45
      %v48 = vmul.f32 %v46, %v46
      %49 = vadd.xlane.f32.xlu0 %v47
      %v50 = vpop.xlane.xlu0 %49
      %51 = vadd.xlane.f32.xlu0 %v48
      %v52 = vpop.xlane.xlu0 %51
      %v53 = vmax.f32 %v50, 1e-24
      %v54 = vmax.f32 %v52, 1e-24
      %v55 = vrsqrt.pop %v53
      %v56 = vrsqrt.pop %v54
      %v57 = vmul.f32 %v45, %v55
      %v58 = vmul.f32 %v46, %v56
      %v59 = vpack.c.bf16 %v58, %v57
      %60 = vst [vmem:[#allocation2] sm:$0xff] %v59
    $region21: #{tpu_custom_call.1} parent=1 // pred_fallthru
      _
    %v61 = vld [vmem:[#allocation6] sm:$0xff]
    %v62 = vld [vmem:[#allocation6 + $0x8] sm:$0xff]
    %v63 = vld [vmem:[#allocation6 + $0x10] sm:$0xff]
    %v64 = vld [vmem:[#allocation6 + $0x18] sm:$0xff]
    %v65 = vld [vmem:[#allocation6 + $0x20] sm:$0xff]
    %v66 = vld [vmem:[#allocation6 + $0x28] sm:$0xff]
    %v67 = vld [vmem:[#allocation6 + $0x30] sm:$0xff]
    %v68 = vld [vmem:[#allocation6 + $0x38] sm:$0xff]
    %v69 = vld [vmem:[#allocation6 + $0x40] sm:$0xff]
    %v70 = vld [vmem:[#allocation6 + $0x48] sm:$0xff]
    %v71 = vld [vmem:[#allocation6 + $0x50] sm:$0xff]
    %v72 = vld [vmem:[#allocation6 + $0x58] sm:$0xff]
    %v73 = vld [vmem:[#allocation6 + $0x60] sm:$0xff]
    %v74 = vld [vmem:[#allocation6 + $0x68] sm:$0xff]
    %v75 = vld [vmem:[#allocation6 + $0x70] sm:$0xff]
    %v76 = vld [vmem:[#allocation6 + $0x78] sm:$0xff]
    %v77 = vld [vmem:[#allocation6 + $0x80] sm:$0xff]
    %v78 = vld [vmem:[#allocation6 + $0x88] sm:$0xff]
    %v79 = vld [vmem:[#allocation6 + $0x90] sm:$0xff]
    %v80 = vld [vmem:[#allocation6 + $0x98] sm:$0xff]
    %v81 = vld [vmem:[#allocation6 + $0xa0] sm:$0xff]
    %v82 = vld [vmem:[#allocation6 + $0xa8] sm:$0xff]
    %v83 = vld [vmem:[#allocation6 + $0xb0] sm:$0xff]
    %v84 = vld [vmem:[#allocation6 + $0xb8] sm:$0xff]
    %v85 = vld [vmem:[#allocation6 + $0xc0] sm:$0xff]
    %v86 = vld [vmem:[#allocation6 + $0xc8] sm:$0xff]
    %v87 = vld [vmem:[#allocation6 + $0xd0] sm:$0xff]
    %v88 = vld [vmem:[#allocation6 + $0xd8] sm:$0xff]
    %v89 = vld [vmem:[#allocation6 + $0xe0] sm:$0xff]
    %v90 = vld [vmem:[#allocation6 + $0xe8] sm:$0xff]
    %v91 = vld [vmem:[#allocation6 + $0xf0] sm:$0xff]
    %v92 = vld [vmem:[#allocation6 + $0xf8] sm:$0xff]
    %v93 = vmul.f32 %v61, %v61
    %v94 = vmul.f32 %v62, %v62
    %v95 = vmul.f32 %v63, %v63
    %v96 = vmul.f32 %v64, %v64
    %v97 = vmul.f32 %v65, %v65
    %v98 = vmul.f32 %v66, %v66
    %v99 = vmul.f32 %v67, %v67
    %v100 = vmul.f32 %v68, %v68
    %v101 = vmul.f32 %v69, %v69
    %v102 = vmul.f32 %v70, %v70
    %v103 = vmul.f32 %v71, %v71
    %v104 = vmul.f32 %v72, %v72
    %v105 = vmul.f32 %v73, %v73
    %v106 = vmul.f32 %v74, %v74
    %v107 = vmul.f32 %v75, %v75
    %v108 = vmul.f32 %v76, %v76
    %v109 = vmul.f32 %v77, %v77
    %v110 = vmul.f32 %v78, %v78
    %v111 = vmul.f32 %v79, %v79
    %v112 = vmul.f32 %v80, %v80
    %v113 = vmul.f32 %v81, %v81
    %v114 = vmul.f32 %v82, %v82
    %v115 = vmul.f32 %v83, %v83
    %v116 = vmul.f32 %v84, %v84
    %v117 = vmul.f32 %v85, %v85
    %v118 = vmul.f32 %v86, %v86
    %v119 = vmul.f32 %v87, %v87
    %v120 = vmul.f32 %v88, %v88
    %v121 = vmul.f32 %v89, %v89
    %v122 = vmul.f32 %v90, %v90
    %v123 = vmul.f32 %v91, %v91
    %v124 = vmul.f32 %v92, %v92
    %125 = vadd.xlane.f32.xlu0 %v93
    %v126 = vpop.xlane.xlu0 %125
    %127 = vadd.xlane.f32.xlu0 %v94
    %v128 = vpop.xlane.xlu0 %127
    %129 = vadd.xlane.f32.xlu0 %v95
    %v130 = vpop.xlane.xlu0 %129
    %131 = vadd.xlane.f32.xlu0 %v96
    %v132 = vpop.xlane.xlu0 %131
    %133 = vadd.xlane.f32.xlu0 %v97
    %v134 = vpop.xlane.xlu0 %133
    %135 = vadd.xlane.f32.xlu0 %v98
    %v136 = vpop.xlane.xlu0 %135
    %137 = vadd.xlane.f32.xlu0 %v99
    %v138 = vpop.xlane.xlu0 %137
    %139 = vadd.xlane.f32.xlu0 %v100
    %v140 = vpop.xlane.xlu0 %139
    %141 = vadd.xlane.f32.xlu0 %v101
    %v142 = vpop.xlane.xlu0 %141
    %143 = vadd.xlane.f32.xlu0 %v102
    %v144 = vpop.xlane.xlu0 %143
    %145 = vadd.xlane.f32.xlu0 %v103
    %v146 = vpop.xlane.xlu0 %145
    %147 = vadd.xlane.f32.xlu0 %v104
    %v148 = vpop.xlane.xlu0 %147
    %149 = vadd.xlane.f32.xlu0 %v105
    %v150 = vpop.xlane.xlu0 %149
    %151 = vadd.xlane.f32.xlu0 %v106
    %v152 = vpop.xlane.xlu0 %151
    %153 = vadd.xlane.f32.xlu0 %v107
    %v154 = vpop.xlane.xlu0 %153
    %155 = vadd.xlane.f32.xlu0 %v108
    %v156 = vpop.xlane.xlu0 %155
    %157 = vadd.xlane.f32.xlu0 %v109
    %v158 = vpop.xlane.xlu0 %157
    %159 = vadd.xlane.f32.xlu0 %v110
    %v160 = vpop.xlane.xlu0 %159
    %161 = vadd.xlane.f32.xlu0 %v111
    %v162 = vpop.xlane.xlu0 %161
    %163 = vadd.xlane.f32.xlu0 %v112
    %v164 = vpop.xlane.xlu0 %163
    %165 = vadd.xlane.f32.xlu0 %v113
    %v166 = vpop.xlane.xlu0 %165
    %167 = vadd.xlane.f32.xlu0 %v114
    %v168 = vpop.xlane.xlu0 %167
    %169 = vadd.xlane.f32.xlu0 %v115
    %v170 = vpop.xlane.xlu0 %169
    %171 = vadd.xlane.f32.xlu0 %v116
    %v172 = vpop.xlane.xlu0 %171
    %173 = vadd.xlane.f32.xlu0 %v117
    %v174 = vpop.xlane.xlu0 %173
    %175 = vadd.xlane.f32.xlu0 %v118
    %v176 = vpop.xlane.xlu0 %175
    %177 = vadd.xlane.f32.xlu0 %v119
    %v178 = vpop.xlane.xlu0 %177
    %179 = vadd.xlane.f32.xlu0 %v120
    %v180 = vpop.xlane.xlu0 %179
    %181 = vadd.xlane.f32.xlu0 %v121
    %v182 = vpop.xlane.xlu0 %181
    %183 = vadd.xlane.f32.xlu0 %v122
    %v184 = vpop.xlane.xlu0 %183
    %185 = vadd.xlane.f32.xlu0 %v123
    %v186 = vpop.xlane.xlu0 %185
    %187 = vadd.xlane.f32.xlu0 %v124
    %v188 = vpop.xlane.xlu0 %187
    %v189 = vmax.f32 %v126, 1e-24
    %v190 = vmax.f32 %v128, 1e-24
    %v191 = vmax.f32 %v130, 1e-24
    %v192 = vmax.f32 %v132, 1e-24
    %v193 = vmax.f32 %v134, 1e-24
    %v194 = vmax.f32 %v136, 1e-24
    %v195 = vmax.f32 %v138, 1e-24
    %v196 = vmax.f32 %v140, 1e-24
    %v197 = vmax.f32 %v142, 1e-24
    %v198 = vmax.f32 %v144, 1e-24
    %v199 = vmax.f32 %v146, 1e-24
    %v200 = vmax.f32 %v148, 1e-24
    %v201 = vmax.f32 %v150, 1e-24
    %v202 = vmax.f32 %v152, 1e-24
    %v203 = vmax.f32 %v154, 1e-24
    %v204 = vmax.f32 %v156, 1e-24
    %v205 = vmax.f32 %v158, 1e-24
    %v206 = vmax.f32 %v160, 1e-24
    %v207 = vmax.f32 %v162, 1e-24
    %v208 = vmax.f32 %v164, 1e-24
    %v209 = vmax.f32 %v166, 1e-24
    %v210 = vmax.f32 %v168, 1e-24
    %v211 = vmax.f32 %v170, 1e-24
    %v212 = vmax.f32 %v172, 1e-24
    %v213 = vmax.f32 %v174, 1e-24
    %v214 = vmax.f32 %v176, 1e-24
    %v215 = vmax.f32 %v178, 1e-24
    %v216 = vmax.f32 %v180, 1e-24
    %v217 = vmax.f32 %v182, 1e-24
    %v218 = vmax.f32 %v184, 1e-24
    %v219 = vmax.f32 %v186, 1e-24
    %v220 = vmax.f32 %v188, 1e-24
    %v221 = vrsqrt.pop %v189
    %v222 = vrsqrt.pop %v190
    %v223 = vrsqrt.pop %v191
    %v224 = vrsqrt.pop %v192
    %v225 = vrsqrt.pop %v193
    %v226 = vrsqrt.pop %v194
    %v227 = vrsqrt.pop %v195
    %v228 = vrsqrt.pop %v196
    %v229 = vrsqrt.pop %v197
    %v230 = vrsqrt.pop %v198
    %v231 = vrsqrt.pop %v199
    %v232 = vrsqrt.pop %v200
    %v233 = vrsqrt.pop %v201
    %v234 = vrsqrt.pop %v202
    %v235 = vrsqrt.pop %v203
    %v236 = vrsqrt.pop %v204
    %v237 = vrsqrt.pop %v205
    %v238 = vrsqrt.pop %v206
    %v239 = vrsqrt.pop %v207
    %v240 = vrsqrt.pop %v208
    %v241 = vrsqrt.pop %v209
    %v242 = vrsqrt.pop %v210
    %v243 = vrsqrt.pop %v211
    %v244 = vrsqrt.pop %v212
    %v245 = vrsqrt.pop %v213
    %v246 = vrsqrt.pop %v214
    %v247 = vrsqrt.pop %v215
    %v248 = vrsqrt.pop %v216
    %v249 = vrsqrt.pop %v217
    %v250 = vrsqrt.pop %v218
    %v251 = vrsqrt.pop %v219
    %v252 = vrsqrt.pop %v220
    %v253 = vmul.f32 %v61, %v221
    %v254 = vmul.f32 %v62, %v222
    %v255 = vmul.f32 %v63, %v223
    %v256 = vmul.f32 %v64, %v224
    %v257 = vmul.f32 %v65, %v225
    %v258 = vmul.f32 %v66, %v226
    %v259 = vmul.f32 %v67, %v227
    %v260 = vmul.f32 %v68, %v228
    %v261 = vmul.f32 %v69, %v229
    %v262 = vmul.f32 %v70, %v230
    %v263 = vmul.f32 %v71, %v231
    %v264 = vmul.f32 %v72, %v232
    %v265 = vmul.f32 %v73, %v233
    %v266 = vmul.f32 %v74, %v234
    %v267 = vmul.f32 %v75, %v235
    %v268 = vmul.f32 %v76, %v236
    %v269 = vmul.f32 %v77, %v237
    %v270 = vmul.f32 %v78, %v238
    %v271 = vmul.f32 %v79, %v239
    %v272 = vmul.f32 %v80, %v240
    %v273 = vmul.f32 %v81, %v241
    %v274 = vmul.f32 %v82, %v242
    %v275 = vmul.f32 %v83, %v243
    %v276 = vmul.f32 %v84, %v244
    %v277 = vmul.f32 %v85, %v245
    %v278 = vmul.f32 %v86, %v246
    %v279 = vmul.f32 %v87, %v247
    %v280 = vmul.f32 %v88, %v248
    %v281 = vmul.f32 %v89, %v249
    %v282 = vmul.f32 %v90, %v250
    %v283 = vmul.f32 %v91, %v251
    %v284 = vmul.f32 %v92, %v252
    %v285 = vpack.c.bf16 %v254, %v253
    %v286 = vpack.c.bf16 %v256, %v255
    %v287 = vpack.c.bf16 %v258, %v257
    %v288 = vpack.c.bf16 %v260, %v259
    %v289 = vpack.c.bf16 %v262, %v261
    %v290 = vpack.c.bf16 %v264, %v263
    %v291 = vpack.c.bf16 %v266, %v265
    %v292 = vpack.c.bf16 %v268, %v267
    %v293 = vpack.c.bf16 %v270, %v269
    %v294 = vpack.c.bf16 %v272, %v271
    %v295 = vpack.c.bf16 %v274, %v273
    %v296 = vpack.c.bf16 %v276, %v275
    %v297 = vpack.c.bf16 %v278, %v277
    %v298 = vpack.c.bf16 %v280, %v279
    %v299 = vpack.c.bf16 %v282, %v281
    %v300 = vpack.c.bf16 %v284, %v283
    %v301 = vld [vmem:[#allocation2] sm:$0xff]
    %302 = vmatprep.subr.bf16.mxu0 0
    %303 = vmatpush1.bf16.xpose.msra.mxu0 %v285
    %304 = vmatprep.subr.bf16.mxu0 0
    %305 = vmatpush1.bf16.xpose.msra.mxu0 %v286
    %306 = vmatprep.subr.bf16.mxu0 0
    %307 = vmatpush1.bf16.xpose.msra.mxu0 %v287
    %308 = vmatprep.subr.bf16.mxu0 0
    %309 = vmatpush1.bf16.xpose.msra.mxu0 %v288
    %310 = vmatprep.subr.bf16.mxu0 0
    %311 = vmatpush1.bf16.xpose.msra.mxu0 %v289
    %312 = vmatprep.subr.bf16.mxu0 0
    %313 = vmatpush1.bf16.xpose.msra.mxu0 %v290
    %314 = vmatprep.subr.bf16.mxu0 0
    %315 = vmatpush1.bf16.xpose.msra.mxu0 %v291
    %316 = vmatprep.subr.bf16.mxu0 0
    %317 = vmatpush1.bf16.xpose.msra.mxu0 %v292
    %318 = vmatprep.subr.bf16.mxu0 0
    %319 = vmatpush1.bf16.xpose.msra.mxu0 %v293
    %320 = vmatprep.subr.bf16.mxu0 0
    %321 = vmatpush1.bf16.xpose.msra.mxu0 %v294
    %322 = vmatprep.subr.bf16.mxu0 0
    %323 = vmatpush1.bf16.xpose.msra.mxu0 %v295
    %324 = vmatprep.subr.bf16.mxu0 0
    %325 = vmatpush1.bf16.xpose.msra.mxu0 %v296
    %326 = vmatprep.subr.bf16.mxu0 0
    %327 = vmatpush1.bf16.xpose.msra.mxu0 %v297
    %328 = vmatprep.subr.bf16.mxu0 0
    %329 = vmatpush1.bf16.xpose.msra.mxu0 %v298
    %330 = vmatprep.subr.bf16.mxu0 0
    %331 = vmatpush1.bf16.xpose.msra.mxu0 %v299
    %332 = vmatprep.subr.bf16.mxu0 0
    %333 = vmatpush1.bf16.xpose.msra.mxu0 %v300
    %334 = vmatprep.mubr.bf16.mxu0 0
    %335 = vmatmul.mubr.bf16.gmra.mrb[0].mxu0 %v301
    %v336 = vpop.f32.mrb[0].mxu0
    %v337 = vadd.f32 0.0, %v336
    %v338 = vpop.f32.mrb[0].mxu0
    %v339 = vadd.f32 0.0, %v338
    %v340 = vpop.f32.mrb[0].mxu0
    %v341 = vadd.f32 0.0, %v340
    %v342 = vpop.f32.mrb[0].mxu0
    %v343 = vadd.f32 0.0, %v342
    %344 = vdwg.mxu0
    %345 = vst [vmem:[#allocation8] sm:$0xff] %v337
    %346 = vst [vmem:[#allocation8 + $0x8] sm:$0xff] %v339
    %347 = vst [vmem:[#allocation8 + $0x10] sm:$0xff] %v341
    %348 = vst [vmem:[#allocation8 + $0x18] sm:$0xff] %v343
    // Predicated region
    $region22: #{tpu_custom_call.1} parent=1 // pred_check
      _
    $region23: #{tpu_custom_call.1} parent=1 // pred_check_branch
      %350 = sbr.rel (0) target = $region25
    $region24: #{tpu_custom_call.1} parent=1 // pred_region
      %s352 = ssub.s32 512, 512
      %353 = vsyncadd [#allocation5], %s352
      %s354 = sshll.u32 [#allocation8], 4
      %s355 = int_to_ptr.vmem [resolvable:$true] %s354
      %360 = dma.vmem_to_hbm [thread:$0]  %s355, 512, %s2, [#allocation5], 256, 256, 16
    $region25: #{tpu_custom_call.1} parent=1 // pred_fallthru
      _
    // Predicated region
    $region26: #{tpu_custom_call.1} parent=1 // pred_check
      _
    $region27: #{tpu_custom_call.1} parent=1 // pred_check_branch
      %362 = sbr.rel (0) target = $region29
    $region28: #{tpu_custom_call.1} parent=1 // pred_region
      %363 = dma.done [#allocation5], 512
    $region29: #{tpu_custom_call.1} parent=1 // pred_fallthru
      _
    %364 = vsyncpa [#allocation4], 1
    %365 = vsyncpa [#allocation7], 1
    %366 = vsyncpa [#allocation5], 1

</llo_original>
